<compile_context>
chip_gen: v7x
topology: tpu7x:2x2x1
jax: 0.10.0
libtpu: 0.0.40
codegen_flags: <defaults>
</compile_context>

<pallas_src>
import functools
import math

import jax
import jax.numpy as jnp
from jax.experimental import pallas as pl
from jax.experimental.pallas import tpu as pltpu


def deepset_kernel(x_ref, pool_ref,
                   w1_ref, w2_ref, w3_ref, w4_ref,
                   w5_ref, w6_ref, w7_ref, w8_ref,
                   b_ref, o_ref,
                   *, h_pad, out_pad, compute_dtype):
    """One batch-block: encoder MLP -> per-batch mean -> decoder MLP."""
    f32 = jnp.float32

    def dense(h, w_ref, layer, width, relu):
        # Matmul operands in compute_dtype (bf16), accumulate in f32 on the MXU.
        y = jnp.dot(h.astype(compute_dtype), w_ref[...],
                    preferred_element_type=f32)
        y = y + b_ref[layer:layer + 1, :width]          # f32 bias add (VPU)
        return jnp.maximum(y, 0.0) if relu else y

    # ---- encoder: Linear/ReLU x3 + final Linear (no ReLU) ----
    h = x_ref[...]                                      # (BB*N, dim_input)
    h = dense(h, w1_ref, 0, h_pad, True)
    h = dense(h, w2_ref, 1, h_pad, True)
    h = dense(h, w3_ref, 2, h_pad, True)
    h = dense(h, w4_ref, 3, h_pad, False)               # (BB*N, h_pad) f32

    # ---- mean over the set axis: tiny block-diagonal (BB, BB*N) matmul ----
    # pool_ref[b, b*N + n] = 1/N, constant across grid steps (resident).
    pooled = jnp.dot(pool_ref[...], h, preferred_element_type=f32)  # (BB, h_pad)

    # ---- decoder: Linear/ReLU x3 + final Linear ----
    d = dense(pooled, w5_ref, 4, h_pad, True)
    d = dense(d, w6_ref, 5, h_pad, True)
    d = dense(d, w7_ref, 6, h_pad, True)
    d = dense(d, w8_ref, 7, out_pad, False)             # (BB, out_pad)

    o_ref[...] = d.astype(o_ref.dtype)


def _round_up(x, m):
    return (x + m - 1) // m * m


def init_linear(key, fan_in, fan_out):
    """PyTorch nn.Linear default init: U(-1/sqrt(fan_in), 1/sqrt(fan_in))."""
    kw, kb = jax.random.split(key)
    bound = 1.0 / math.sqrt(fan_in)
    # Weight stored already transposed: (fan_in, fan_out), so kernel does x @ W.
    w = jax.random.uniform(kw, (fan_in, fan_out), jnp.float32, -bound, bound)
    b = jax.random.uniform(kb, (fan_out,), jnp.float32, -bound, bound)
    return w, b


def make_deepset_params(key, dim_input, num_outputs, dim_output, dim_hidden):
    dims = [
        (dim_input, dim_hidden), (dim_hidden, dim_hidden),
        (dim_hidden, dim_hidden), (dim_hidden, dim_hidden),                   # enc
        (dim_hidden, dim_hidden), (dim_hidden, dim_hidden),
        (dim_hidden, dim_hidden), (dim_hidden, num_outputs * dim_output),     # dec
    ]
    keys = jax.random.split(key, len(dims))
    params = []
    for k, (fi, fo) in zip(keys, dims):
        params.extend(init_linear(k, fi, fo))
    return params  # [w1, b1, ..., w8, b8]


@functools.partial(
    jax.jit,
    static_argnames=("num_outputs", "dim_output", "compute_dtype",
                     "target_block_rows"))
def deepset_forward(x, params, *, num_outputs, dim_output,
                    compute_dtype=jnp.bfloat16, target_block_rows=512):
    """x: (B, N, dim_input) -> (B, num_outputs, dim_output)"""
    B, N, dim_input = x.shape
    dim_hidden = params[0].shape[1]
    out_dim = num_outputs * dim_output

    # Lane-align feature dims (128) so MXU tiles / output stores are dense.
    h_pad = _round_up(dim_hidden, 128)
    out_pad = _round_up(out_dim, 128)
    bias_w = max(h_pad, out_pad)

    # ---- choose batch-block (BB batches per grid step) ----
    # rows per step = BB*N; target ~512 rows (>=85% HBM roofline per measured
    # curve), BB multiple of 8 when gridded so output sublane tiles are aligned.
    if B <= 8:
        bb = B                                   # single block, full-dim tiles
    else:
        bb = max(1, target_block_rows // max(N, 1))
        bb = min(bb, B)
        bb = max(8, (bb // 8) * 8)
    b_pad = _round_up(B, bb)
    num_blocks = b_pad // bb
    # TODO(synk): for very large N (BB*N rows >> VMEM budget), also tile the
    # set axis with a pl.when-gated partial-sum accumulator.

    # ---- pad/pack parameters (zero padding keeps the math exact) ----
    w_list, b_rows = [], []
    for li in range(8):
        w_, b_ = params[2 * li], params[2 * li + 1]
        fan_in, fan_out = w_.shape
        in_p = dim_input if li == 0 else h_pad
        out_p = h_pad if li < 7 else out_pad
        wp = jnp.zeros((in_p, out_p), jnp.float32).at[:fan_in, :fan_out].set(w_)
        bp = jnp.zeros((bias_w,), jnp.float32).at[:fan_out].set(b_.reshape(-1))
        w_list.append(wp.astype(compute_dtype))
        b_rows.append(bp)
    biases = jnp.stack(b_rows, axis=0)               # (8, bias_w) f32, one operand

    # ---- inputs: flatten set, pad batch, cast matmul operand to bf16 ----
    x2d = x.reshape(B * N, dim_input).astype(jnp.float32)
    if b_pad != B:
        x2d = jnp.pad(x2d, ((0, (b_pad - B) * N), (0, 0)))
    x2d = x2d.astype(compute_dtype)

    # Per-block averaging matrix (BB, BB*N): block-diagonal 1/N, resident.
    row = jax.lax.broadcasted_iota(jnp.int32, (bb, bb * N), 0)
    col = jax.lax.broadcasted_iota(jnp.int32, (bb, bb * N), 1)
    pool = jnp.where(col // N == row, 1.0 / N, 0.0).astype(jnp.float32)

    # ---- VMEM budget (sized for v7x 64 MiB / v5e 16 MiB-default targets) ----
    bpe = jnp.dtype(compute_dtype).itemsize
    resident_bytes = (sum(int(w.size) for w in w_list) * bpe
                      + int(biases.size) * 4 + int(pool.size) * 4)
    block_io_bytes = 2 * (bb * N * dim_input * bpe + bb * out_pad * 4)  # dbl-buf
    act_bytes = 2 * bb * N * h_pad * (4 + bpe)
    vmem_limit = int(max(32 * 2 ** 20,
                         min(2 * (resident_bytes + block_io_bytes + act_bytes),
                             48 * 2 ** 20)))

    kernel = functools.partial(deepset_kernel, h_pad=h_pad, out_pad=out_pad,
                               compute_dtype=compute_dtype)

    in_specs = [
        pl.BlockSpec((bb * N, dim_input), lambda i: (i, 0)),   # x rows (pipelined)
        pl.BlockSpec((bb, bb * N), lambda i: (0, 0)),          # pool (resident)
    ]
    for wp in w_list:                                          # weights (resident)
        in_specs.append(pl.BlockSpec(wp.shape, lambda i: (0, 0)))
    in_specs.append(pl.BlockSpec(biases.shape, lambda i: (0, 0)))  # packed biases

    out = pl.pallas_call(
        kernel,
        out_shape=jax.ShapeDtypeStruct((b_pad, out_pad), jnp.float32),
        grid_spec=pltpu.PrefetchScalarGridSpec(
            num_scalar_prefetch=0,
            grid=(num_blocks,),
            in_specs=in_specs,
            out_specs=pl.BlockSpec((bb, out_pad), lambda i: (i, 0)),
        ),
        compiler_params=pltpu.CompilerParams(
            dimension_semantics=("parallel",),        # shard batch blocks on v7x's 2 TCs
            vmem_limit_bytes=vmem_limit,
        ),
    )(x2d, pool, *w_list, biases)

    return out[:B, :out_dim].reshape(B, num_outputs, dim_output)


def deepset_reference(x, params, num_outputs, dim_output,
                      compute_dtype=jnp.float32):
    """Pure-JAX reference matching the PyTorch forward.

    compute_dtype=f32  -> exact PyTorch-equivalent math.
    compute_dtype=bf16 -> same matmul precision as the kernel (f32 accumulate).
    """
    (w1, b1, w2, b2, w3, b3, w4, b4,
     w5, b5, w6, b6, w7, b7, w8, b8) = params

    def dense(h, w, b, relu):
        y = jnp.dot(h.astype(compute_dtype), w.astype(compute_dtype),
                    preferred_element_type=jnp.float32) + b.reshape(1, -1)
        return jnp.maximum(y, 0.0) if relu else y

    B, N, D = x.shape
    h = x.reshape(B * N, D).astype(jnp.float32)
    h = dense(h, w1, b1, True)
    h = dense(h, w2, b2, True)
    h = dense(h, w3, b3, True)
    h = dense(h, w4, b4, False)
    h = h.reshape(B, N, -1).mean(axis=1)
    d = dense(h, w5, b5, True)
    d = dense(d, w6, b6, True)
    d = dense(d, w7, b7, True)
    d = dense(d, w8, b8, False)
    return d.reshape(B, num_outputs, dim_output)


if __name__ == "__main__":
    # Small shapes consistent with the module (dim_hidden=128 is the nn default).
    B, N = 2, 8
    dim_input = 4
    dim_hidden = 128
    num_outputs = 4
    dim_output = 4

    key = jax.random.PRNGKey(0)
    k_x, k_p, k_x2 = jax.random.split(key, 3)

    x = jax.random.normal(k_x, (B, N, dim_input), jnp.float32)
    params = make_deepset_params(k_p, dim_input, num_outputs, dim_output,
                                 dim_hidden)

    out = deepset_forward(x, params, num_outputs=num_outputs,
                          dim_output=dim_output)
    out = jax.block_until_ready(out)
    assert out.shape == (B, num_outputs, dim_output), out.shape

    ref_matched = deepset_reference(x, params, num_outputs, dim_output,
                                    compute_dtype=jnp.bfloat16)
    ref_f32 = deepset_reference(x, params, num_outputs, dim_output,
                                compute_dtype=jnp.float32)
    assert bool(jnp.allclose(out, ref_matched, atol=2e-3, rtol=2e-3)), \
        "mismatch vs precision-matched reference"
    assert bool(jnp.allclose(out, ref_f32, atol=5e-2, rtol=5e-2)), \
        "mismatch vs f32 reference"

    # Multi-block path: grid > 1, batch not a multiple of the block (padded).
    B2 = 10
    x2 = jax.random.normal(k_x2, (B2, N, dim_input), jnp.float32)
    out2 = jax.block_until_ready(
        deepset_forward(x2, params, num_outputs=num_outputs,
                        dim_output=dim_output, target_block_rows=64))
    ref2 = deepset_reference(x2, params, num_outputs, dim_output,
                             compute_dtype=jnp.bfloat16)
    assert out2.shape == (B2, num_outputs, dim_output), out2.shape
    assert bool(jnp.allclose(out2, ref2, atol=2e-3, rtol=2e-3)), \
        "mismatch vs reference (multi-block path)"

    print("KERNEL_OK")
</pallas_src>

<mosaic_0001>
module attributes {stable_mosaic.version = 11 : i64} {
  func.func @deepset_kernel(%arg0: i32, %arg1: memref<16x4xbf16, #tpu.memory_space<vmem>>, %arg2: memref<2x16xf32, #tpu.memory_space<vmem>>, %arg3: memref<4x128xbf16, #tpu.memory_space<vmem>>, %arg4: memref<128x128xbf16, #tpu.memory_space<vmem>>, %arg5: memref<128x128xbf16, #tpu.memory_space<vmem>>, %arg6: memref<128x128xbf16, #tpu.memory_space<vmem>>, %arg7: memref<128x128xbf16, #tpu.memory_space<vmem>>, %arg8: memref<128x128xbf16, #tpu.memory_space<vmem>>, %arg9: memref<128x128xbf16, #tpu.memory_space<vmem>>, %arg10: memref<128x128xbf16, #tpu.memory_space<vmem>>, %arg11: memref<8x128xf32, #tpu.memory_space<vmem>>, %arg12: memref<2x128xf32, #tpu.memory_space<vmem>>) attributes {dimension_semantics = [#tpu.dimension_semantics<parallel>], iteration_bounds = array<i64: 1>, scalar_prefetch = 0 : i64, scratch_operands = 0 : i64, tpu.core_type = #tpu.core_type<tc>, window_params = [{transform_indices = @transform_0, window_bounds = array<i64: 16, 4>}, {pipeline_mode = #tpu.pipeline_mode<synchronous>, transform_indices = @transform_1, window_bounds = array<i64: 2, 16>}, {pipeline_mode = #tpu.pipeline_mode<synchronous>, transform_indices = @transform_2, window_bounds = array<i64: 4, 128>}, {pipeline_mode = #tpu.pipeline_mode<synchronous>, transform_indices = @transform_3, window_bounds = array<i64: 128, 128>}, {pipeline_mode = #tpu.pipeline_mode<synchronous>, transform_indices = @transform_4, window_bounds = array<i64: 128, 128>}, {pipeline_mode = #tpu.pipeline_mode<synchronous>, transform_indices = @transform_5, window_bounds = array<i64: 128, 128>}, {pipeline_mode = #tpu.pipeline_mode<synchronous>, transform_indices = @transform_6, window_bounds = array<i64: 128, 128>}, {pipeline_mode = #tpu.pipeline_mode<synchronous>, transform_indices = @transform_7, window_bounds = array<i64: 128, 128>}, {pipeline_mode = #tpu.pipeline_mode<synchronous>, transform_indices = @transform_8, window_bounds = array<i64: 128, 128>}, {pipeline_mode = #tpu.pipeline_mode<synchronous>, transform_indices = @transform_9, window_bounds = array<i64: 128, 128>}, {pipeline_mode = #tpu.pipeline_mode<synchronous>, transform_indices = @transform_10, window_bounds = array<i64: 8, 128>}, {transform_indices = @transform_11, window_bounds = array<i64: 2, 128>}]} {
    %c0 = arith.constant 0 : index
    %c0_0 = arith.constant 0 : index
    %0 = vector.load %arg1[%c0, %c0_0] : memref<16x4xbf16, #tpu.memory_space<vmem>>, vector<16x4xbf16>
    %c0_1 = arith.constant 0 : index
    %c0_2 = arith.constant 0 : index
    %1 = vector.load %arg3[%c0_1, %c0_2] : memref<4x128xbf16, #tpu.memory_space<vmem>>, vector<4x128xbf16>
    %cst = arith.constant dense<0.000000e+00> : vector<16x128xf32>
    %2 = tpu.matmul %0, %1, %cst {dimension_numbers = #tpu.dot_dimension_numbers<[1], [0], [0], [1], [0, 0, 1, 1], [], []>} : vector<16x4xbf16>, vector<4x128xbf16>, vector<16x128xf32> -> vector<16x128xf32>
    %c0_3 = arith.constant 0 : index
    %c0_4 = arith.constant 0 : index
    %3 = vector.load %arg11[%c0_3, %c0_4] : memref<8x128xf32, #tpu.memory_space<vmem>>, vector<1x128xf32>
    %4 = vector.broadcast %3 : vector<1x128xf32> to vector<16x128xf32>
    %5 = arith.addf %2, %4 : vector<16x128xf32>
    %cst_5 = arith.constant 0.000000e+00 : f32
    %6 = vector.broadcast %cst_5 : f32 to vector<16x128xf32>
    %7 = arith.maximumf %5, %6 : vector<16x128xf32>
    %8 = arith.truncf %7 : vector<16x128xf32> to vector<16x128xbf16>
    %c0_6 = arith.constant 0 : index
    %c0_7 = arith.constant 0 : index
    %9 = vector.load %arg4[%c0_6, %c0_7] : memref<128x128xbf16, #tpu.memory_space<vmem>>, vector<128x128xbf16>
    %cst_8 = arith.constant dense<0.000000e+00> : vector<16x128xf32>
    %10 = tpu.matmul %8, %9, %cst_8 {dimension_numbers = #tpu.dot_dimension_numbers<[1], [0], [0], [1], [0, 0, 1, 1], [], []>} : vector<16x128xbf16>, vector<128x128xbf16>, vector<16x128xf32> -> vector<16x128xf32>
    %c1 = arith.constant 1 : index
    %c0_9 = arith.constant 0 : index
    %11 = vector.load %arg11[%c1, %c0_9] : memref<8x128xf32, #tpu.memory_space<vmem>>, vector<1x128xf32>
    %12 = vector.broadcast %11 : vector<1x128xf32> to vector<16x128xf32>
    %13 = arith.addf %10, %12 : vector<16x128xf32>
    %cst_10 = arith.constant 0.000000e+00 : f32
    %14 = vector.broadcast %cst_10 : f32 to vector<16x128xf32>
    %15 = arith.maximumf %13, %14 : vector<16x128xf32>
    %16 = arith.truncf %15 : vector<16x128xf32> to vector<16x128xbf16>
    %c0_11 = arith.constant 0 : index
    %c0_12 = arith.constant 0 : index
    %17 = vector.load %arg5[%c0_11, %c0_12] : memref<128x128xbf16, #tpu.memory_space<vmem>>, vector<128x128xbf16>
    %cst_13 = arith.constant dense<0.000000e+00> : vector<16x128xf32>
    %18 = tpu.matmul %16, %17, %cst_13 {dimension_numbers = #tpu.dot_dimension_numbers<[1], [0], [0], [1], [0, 0, 1, 1], [], []>} : vector<16x128xbf16>, vector<128x128xbf16>, vector<16x128xf32> -> vector<16x128xf32>
    %c2 = arith.constant 2 : index
    %c0_14 = arith.constant 0 : index
    %19 = vector.load %arg11[%c2, %c0_14] : memref<8x128xf32, #tpu.memory_space<vmem>>, vector<1x128xf32>
    %20 = vector.broadcast %19 : vector<1x128xf32> to vector<16x128xf32>
    %21 = arith.addf %18, %20 : vector<16x128xf32>
    %cst_15 = arith.constant 0.000000e+00 : f32
    %22 = vector.broadcast %cst_15 : f32 to vector<16x128xf32>
    %23 = arith.maximumf %21, %22 : vector<16x128xf32>
    %24 = arith.truncf %23 : vector<16x128xf32> to vector<16x128xbf16>
    %c0_16 = arith.constant 0 : index
    %c0_17 = arith.constant 0 : index
    %25 = vector.load %arg6[%c0_16, %c0_17] : memref<128x128xbf16, #tpu.memory_space<vmem>>, vector<128x128xbf16>
    %cst_18 = arith.constant dense<0.000000e+00> : vector<16x128xf32>
    %26 = tpu.matmul %24, %25, %cst_18 {dimension_numbers = #tpu.dot_dimension_numbers<[1], [0], [0], [1], [0, 0, 1, 1], [], []>} : vector<16x128xbf16>, vector<128x128xbf16>, vector<16x128xf32> -> vector<16x128xf32>
    %c3 = arith.constant 3 : index
    %c0_19 = arith.constant 0 : index
    %27 = vector.load %arg11[%c3, %c0_19] : memref<8x128xf32, #tpu.memory_space<vmem>>, vector<1x128xf32>
    %28 = vector.broadcast %27 : vector<1x128xf32> to vector<16x128xf32>
    %29 = arith.addf %26, %28 : vector<16x128xf32>
    %c0_20 = arith.constant 0 : index
    %c0_21 = arith.constant 0 : index
    %30 = vector.load %arg2[%c0_20, %c0_21] : memref<2x16xf32, #tpu.memory_space<vmem>>, vector<2x16xf32>
    %cst_22 = arith.constant dense<0.000000e+00> : vector<2x128xf32>
    %31 = tpu.matmul %30, %29, %cst_22 {dimension_numbers = #tpu.dot_dimension_numbers<[1], [0], [0], [1], [0, 0, 1, 1], [], []>} : vector<2x16xf32>, vector<16x128xf32>, vector<2x128xf32> -> vector<2x128xf32>
    %32 = arith.truncf %31 : vector<2x128xf32> to vector<2x128xbf16>
    %c0_23 = arith.constant 0 : index
    %c0_24 = arith.constant 0 : index
    %33 = vector.load %arg7[%c0_23, %c0_24] : memref<128x128xbf16, #tpu.memory_space<vmem>>, vector<128x128xbf16>
    %cst_25 = arith.constant dense<0.000000e+00> : vector<2x128xf32>
    %34 = tpu.matmul %32, %33, %cst_25 {dimension_numbers = #tpu.dot_dimension_numbers<[1], [0], [0], [1], [0, 0, 1, 1], [], []>} : vector<2x128xbf16>, vector<128x128xbf16>, vector<2x128xf32> -> vector<2x128xf32>
    %c4 = arith.constant 4 : index
    %c0_26 = arith.constant 0 : index
    %35 = vector.load %arg11[%c4, %c0_26] : memref<8x128xf32, #tpu.memory_space<vmem>>, vector<1x128xf32>
    %36 = vector.broadcast %35 : vector<1x128xf32> to vector<2x128xf32>
    %37 = arith.addf %34, %36 : vector<2x128xf32>
    %cst_27 = arith.constant 0.000000e+00 : f32
    %38 = vector.broadcast %cst_27 : f32 to vector<2x128xf32>
    %39 = arith.maximumf %37, %38 : vector<2x128xf32>
    %40 = arith.truncf %39 : vector<2x128xf32> to vector<2x128xbf16>
    %c0_28 = arith.constant 0 : index
    %c0_29 = arith.constant 0 : index
    %41 = vector.load %arg8[%c0_28, %c0_29] : memref<128x128xbf16, #tpu.memory_space<vmem>>, vector<128x128xbf16>
    %cst_30 = arith.constant dense<0.000000e+00> : vector<2x128xf32>
    %42 = tpu.matmul %40, %41, %cst_30 {dimension_numbers = #tpu.dot_dimension_numbers<[1], [0], [0], [1], [0, 0, 1, 1], [], []>} : vector<2x128xbf16>, vector<128x128xbf16>, vector<2x128xf32> -> vector<2x128xf32>
    %c5 = arith.constant 5 : index
    %c0_31 = arith.constant 0 : index
    %43 = vector.load %arg11[%c5, %c0_31] : memref<8x128xf32, #tpu.memory_space<vmem>>, vector<1x128xf32>
    %44 = vector.broadcast %43 : vector<1x128xf32> to vector<2x128xf32>
    %45 = arith.addf %42, %44 : vector<2x128xf32>
    %cst_32 = arith.constant 0.000000e+00 : f32
    %46 = vector.broadcast %cst_32 : f32 to vector<2x128xf32>
    %47 = arith.maximumf %45, %46 : vector<2x128xf32>
    %48 = arith.truncf %47 : vector<2x128xf32> to vector<2x128xbf16>
    %c0_33 = arith.constant 0 : index
    %c0_34 = arith.constant 0 : index
    %49 = vector.load %arg9[%c0_33, %c0_34] : memref<128x128xbf16, #tpu.memory_space<vmem>>, vector<128x128xbf16>
    %cst_35 = arith.constant dense<0.000000e+00> : vector<2x128xf32>
    %50 = tpu.matmul %48, %49, %cst_35 {dimension_numbers = #tpu.dot_dimension_numbers<[1], [0], [0], [1], [0, 0, 1, 1], [], []>} : vector<2x128xbf16>, vector<128x128xbf16>, vector<2x128xf32> -> vector<2x128xf32>
    %c6 = arith.constant 6 : index
    %c0_36 = arith.constant 0 : index
    %51 = vector.load %arg11[%c6, %c0_36] : memref<8x128xf32, #tpu.memory_space<vmem>>, vector<1x128xf32>
    %52 = vector.broadcast %51 : vector<1x128xf32> to vector<2x128xf32>
    %53 = arith.addf %50, %52 : vector<2x128xf32>
    %cst_37 = arith.constant 0.000000e+00 : f32
    %54 = vector.broadcast %cst_37 : f32 to vector<2x128xf32>
    %55 = arith.maximumf %53, %54 : vector<2x128xf32>
    %56 = arith.truncf %55 : vector<2x128xf32> to vector<2x128xbf16>
    %c0_38 = arith.constant 0 : index
    %c0_39 = arith.constant 0 : index
    %57 = vector.load %arg10[%c0_38, %c0_39] : memref<128x128xbf16, #tpu.memory_space<vmem>>, vector<128x128xbf16>
    %cst_40 = arith.constant dense<0.000000e+00> : vector<2x128xf32>
    %58 = tpu.matmul %56, %57, %cst_40 {dimension_numbers = #tpu.dot_dimension_numbers<[1], [0], [0], [1], [0, 0, 1, 1], [], []>} : vector<2x128xbf16>, vector<128x128xbf16>, vector<2x128xf32> -> vector<2x128xf32>
    %c7 = arith.constant 7 : index
    %c0_41 = arith.constant 0 : index
    %59 = vector.load %arg11[%c7, %c0_41] : memref<8x128xf32, #tpu.memory_space<vmem>>, vector<1x128xf32>
    %60 = vector.broadcast %59 : vector<1x128xf32> to vector<2x128xf32>
    %61 = arith.addf %58, %60 : vector<2x128xf32>
    %c0_42 = arith.constant 0 : index
    %c0_43 = arith.constant 0 : index
    %62 = vector.load %arg12[%c0_42, %c0_43] : memref<2x128xf32, #tpu.memory_space<vmem>>, vector<2x128xf32>
    tpu.vector_store %arg12[%c0_42, %c0_43], %61 {strides = array<i32>} : memref<2x128xf32, #tpu.memory_space<vmem>>, vector<2x128xf32>,
    return
  }
  func.func @transform_0(%arg0: i32) -> (i32, i32) {
    %c0_i32 = arith.constant 0 : i32
    %c0_i32_0 = arith.constant 0 : i32
    return %arg0, %c0_i32 : i32, i32
  }
  func.func @transform_1(%arg0: i32) -> (i32, i32) {
    %c0_i32 = arith.constant 0 : i32
    %c0_i32_0 = arith.constant 0 : i32
    %c0_i32_1 = arith.constant 0 : i32
    return %c0_i32, %c0_i32_0 : i32, i32
  }
  func.func @transform_2(%arg0: i32) -> (i32, i32) {
    %c0_i32 = arith.constant 0 : i32
    %c0_i32_0 = arith.constant 0 : i32
    %c0_i32_1 = arith.constant 0 : i32
    return %c0_i32, %c0_i32_0 : i32, i32
  }
  func.func @transform_3(%arg0: i32) -> (i32, i32) {
    %c0_i32 = arith.constant 0 : i32
    %c0_i32_0 = arith.constant 0 : i32
    %c0_i32_1 = arith.constant 0 : i32
    return %c0_i32, %c0_i32_0 : i32, i32
  }
  func.func @transform_4(%arg0: i32) -> (i32, i32) {
    %c0_i32 = arith.constant 0 : i32
    %c0_i32_0 = arith.constant 0 : i32
    %c0_i32_1 = arith.constant 0 : i32
    return %c0_i32, %c0_i32_0 : i32, i32
  }
  func.func @transform_5(%arg0: i32) -> (i32, i32) {
    %c0_i32 = arith.constant 0 : i32
    %c0_i32_0 = arith.constant 0 : i32
    %c0_i32_1 = arith.constant 0 : i32
    return %c0_i32, %c0_i32_0 : i32, i32
  }
  func.func @transform_6(%arg0: i32) -> (i32, i32) {
    %c0_i32 = arith.constant 0 : i32
    %c0_i32_0 = arith.constant 0 : i32
    %c0_i32_1 = arith.constant 0 : i32
    return %c0_i32, %c0_i32_0 : i32, i32
  }
  func.func @transform_7(%arg0: i32) -> (i32, i32) {
    %c0_i32 = arith.constant 0 : i32
    %c0_i32_0 = arith.constant 0 : i32
    %c0_i32_1 = arith.constant 0 : i32
    return %c0_i32, %c0_i32_0 : i32, i32
  }
  func.func @transform_8(%arg0: i32) -> (i32, i32) {
    %c0_i32 = arith.constant 0 : i32
    %c0_i32_0 = arith.constant 0 : i32
    %c0_i32_1 = arith.constant 0 : i32
    return %c0_i32, %c0_i32_0 : i32, i32
  }
  func.func @transform_9(%arg0: i32) -> (i32, i32) {
    %c0_i32 = arith.constant 0 : i32
    %c0_i32_0 = arith.constant 0 : i32
    %c0_i32_1 = arith.constant 0 : i32
    return %c0_i32, %c0_i32_0 : i32, i32
  }
  func.func @transform_10(%arg0: i32) -> (i32, i32) {
    %c0_i32 = arith.constant 0 : i32
    %c0_i32_0 = arith.constant 0 : i32
    %c0_i32_1 = arith.constant 0 : i32
    return %c0_i32, %c0_i32_0 : i32, i32
  }
  func.func @transform_11(%arg0: i32) -> (i32, i32) {
    %c0_i32 = arith.constant 0 : i32
    %c0_i32_0 = arith.constant 0 : i32
    return %arg0, %c0_i32 : i32, i32
  }
}

</mosaic_0001>

<llo_original>
// kernel: deepset_forward.1
$region0: #{deepset_forward.1}
  #allocation0 [shape = 'u32[]', space=smem, size = 0x4, offset = 0x4, fixed_abs, tag = 'smem constant byte address 0x4 - core index']
  #allocation1 [shape = 'u32[144,128]{1,0:T(1,128)}', space=vmem, size = 0x12000, scoped, tag = 'internal scratch']
  %s0 = inlined_call_operand.vmem [shape: bf16[16,4], index: 0, kind: input, shape index: {}]
  %s1 = inlined_call_operand.vmem [shape: f32[2,16], index: 1, kind: input, shape index: {}]
  %s2 = inlined_call_operand.vmem [shape: bf16[4,128], index: 2, kind: input, shape index: {}]
  %s3 = inlined_call_operand.vmem [shape: bf16[128,128], index: 3, kind: input, shape index: {}]
  %s4 = inlined_call_operand.vmem [shape: bf16[128,128], index: 4, kind: input, shape index: {}]
  %s5 = inlined_call_operand.vmem [shape: bf16[128,128], index: 5, kind: input, shape index: {}]
  %s6 = inlined_call_operand.vmem [shape: bf16[128,128], index: 6, kind: input, shape index: {}]
  %s7 = inlined_call_operand.vmem [shape: bf16[128,128], index: 7, kind: input, shape index: {}]
  %s8 = inlined_call_operand.vmem [shape: bf16[128,128], index: 8, kind: input, shape index: {}]
  %s9 = inlined_call_operand.vmem [shape: bf16[128,128], index: 9, kind: input, shape index: {}]
  %s10 = inlined_call_operand.vmem [shape: f32[8,128], index: 10, kind: input, shape index: {}]
  %s11 = inlined_call_operand.vmem [shape: f32[2,128], index: 11, kind: output, shape index: {}]
  %s12 = sld [smem:[#allocation0]]
  $region54: #{deepset_forward.1} parent=0
    _
  %s14 = ssub.s32 1, %s12
  %s15 = scalar_select 0, %s14, %s12
  // Predicated region
  $region2: #{deepset_forward.1} parent=0 // pred_check
    _
  $region3: #{deepset_forward.1} parent=0 // pred_check_branch
    %17 = sbr.rel (0) target = $region5
  $region4: #{deepset_forward.1} parent=0 // pred_region
    _
  $region5: #{deepset_forward.1} parent=0 // pred_fallthru
    _
  // Predicated region
  $region6: #{deepset_forward.1} parent=0 // pred_check
    _
  $region7: #{deepset_forward.1} parent=0 // pred_check_branch
    %19 = sbr.rel (0) target = $region9
  $region8: #{deepset_forward.1} parent=0 // pred_region
    _
  $region9: #{deepset_forward.1} parent=0 // pred_fallthru
    _
  // Predicated region
  $region10: #{deepset_forward.1} parent=0 // pred_check
    _
  $region11: #{deepset_forward.1} parent=0 // pred_check_branch
    %21 = sbr.rel (0) target = $region13
  $region12: #{deepset_forward.1} parent=0 // pred_region
    _
  $region13: #{deepset_forward.1} parent=0 // pred_fallthru
    _
  // Predicated region
  $region14: #{deepset_forward.1} parent=0 // pred_check
    _
  $region15: #{deepset_forward.1} parent=0 // pred_check_branch
    %23 = sbr.rel (0) target = $region17
  $region16: #{deepset_forward.1} parent=0 // pred_region
    _
  $region17: #{deepset_forward.1} parent=0 // pred_fallthru
    _
  // Predicated region
  $region18: #{deepset_forward.1} parent=0 // pred_check
    _
  $region19: #{deepset_forward.1} parent=0 // pred_check_branch
    %25 = sbr.rel (0) target = $region21
  $region20: #{deepset_forward.1} parent=0 // pred_region
    _
  $region21: #{deepset_forward.1} parent=0 // pred_fallthru
    _
  // Predicated region
  $region22: #{deepset_forward.1} parent=0 // pred_check
    _
  $region23: #{deepset_forward.1} parent=0 // pred_check_branch
    %27 = sbr.rel (0) target = $region25
  $region24: #{deepset_forward.1} parent=0 // pred_region
    _
  $region25: #{deepset_forward.1} parent=0 // pred_fallthru
    _
  // Predicated region
  $region26: #{deepset_forward.1} parent=0 // pred_check
    _
  $region27: #{deepset_forward.1} parent=0 // pred_check_branch
    %29 = sbr.rel (0) target = $region29
  $region28: #{deepset_forward.1} parent=0 // pred_region
    _
  $region29: #{deepset_forward.1} parent=0 // pred_fallthru
    _
  // Predicated region
  $region30: #{deepset_forward.1} parent=0 // pred_check
    _
  $region31: #{deepset_forward.1} parent=0 // pred_check_branch
    %31 = sbr.rel (0) target = $region33
  $region32: #{deepset_forward.1} parent=0 // pred_region
    _
  $region33: #{deepset_forward.1} parent=0 // pred_fallthru
    _
  // Predicated region
  $region34: #{deepset_forward.1} parent=0 // pred_check
    _
  $region35: #{deepset_forward.1} parent=0 // pred_check_branch
    %33 = sbr.rel (0) target = $region37
  $region36: #{deepset_forward.1} parent=0 // pred_region
    _
  $region37: #{deepset_forward.1} parent=0 // pred_fallthru
    _
  // Predicated region
  $region38: #{deepset_forward.1} parent=0 // pred_check
    _
  $region39: #{deepset_forward.1} parent=0 // pred_check_branch
    %35 = sbr.rel (0) target = $region41
  $region40: #{deepset_forward.1} parent=0 // pred_region
    _
  $region41: #{deepset_forward.1} parent=0 // pred_fallthru
    _
  // Predicated region
  $region42: #{deepset_forward.1} parent=0 // pred_check
    _
  $region43: #{deepset_forward.1} parent=0 // pred_check_branch
    %37 = sbr.rel (0) target = $region45
  $region44: #{deepset_forward.1} parent=0 // pred_region
    _
  $region45: #{deepset_forward.1} parent=0 // pred_fallthru
    _
  %v39 = vld [vmem:[%s0] sm:$0xf]
  %v40 = vld [vmem:[%s0 + $0x4] sm:$0xf]
  %v41 = vld [vmem:[%s2] sm:$0x3]
  %v42 = vld [vmem:[%s10] sm:$0x1]
  %v43 = vlaneseq
  %v44 = vshrl.u32 %v43, 7
  %v45 = vsub.s32 0, %v44
  %v46 = vrot.slane %v42, %v45
  %v49 = vunpack.c.l.b16 %v39
  %v50 = vunpack.c.l.b16 %v40
  %v51 = vpack.c.b16 %v50, %v49
  %vm52 = vcmask 31744
  %v54 = vsel %vm52, %v51, 0
  %vm56 = vcmask 1041408
  %v58 = vsel %vm56, %v41, 0
  %60 = vmatprep.subr.bf16.mxu0 0
  %61 = vmatpush1.bf16.msra.mxu0 %v58
  %62 = vmatprep.subr.bf16.mxu0 0
  %63 = vmatpush1.bf16.msra.mxu0 0
  %64 = vmatprep.subr.bf16.mxu0 0
  %65 = vmatpush1.bf16.msra.mxu0 0
  %66 = vmatprep.subr.bf16.mxu0 0
  %67 = vmatpush1.bf16.msra.mxu0 0
  %68 = vmatprep.subr.bf16.mxu0 0
  %69 = vmatpush1.bf16.msra.mxu0 0
  %70 = vmatprep.subr.bf16.mxu0 0
  %71 = vmatpush1.bf16.msra.mxu0 0
  %72 = vmatprep.subr.bf16.mxu0 0
  %73 = vmatpush1.bf16.msra.mxu0 0
  %74 = vmatprep.subr.bf16.mxu0 0
  %75 = vmatpush1.bf16.msra.mxu0 0
  %76 = vmatprep.subr.bf16.mxu0 0
  %77 = vmatpush1.bf16.msra.mxu0 0
  %78 = vmatprep.subr.bf16.mxu0 0
  %79 = vmatpush1.bf16.msra.mxu0 0
  %80 = vmatprep.subr.bf16.mxu0 0
  %81 = vmatpush1.bf16.msra.mxu0 0
  %82 = vmatprep.subr.bf16.mxu0 0
  %83 = vmatpush1.bf16.msra.mxu0 0
  %84 = vmatprep.subr.bf16.mxu0 0
  %85 = vmatpush1.bf16.msra.mxu0 0
  %86 = vmatprep.subr.bf16.mxu0 0
  %87 = vmatpush1.bf16.msra.mxu0 0
  %88 = vmatprep.subr.bf16.mxu0 0
  %89 = vmatpush1.bf16.msra.mxu0 0
  %90 = vmatprep.subr.bf16.mxu0 0
  %91 = vmatpush1.bf16.msra.mxu0 0
  %92 = vmatprep.mubr.bf16.mxu0 0
  %93 = vmatmul.mubr.bf16.gmra.mrb[0].mxu0 %v54
  %v94 = vpop.f32.mrb[0].mxu0
  %v95 = vadd.f32 %v46, %v94
  %v96 = vpop.f32.mrb[0].mxu0
  %v97 = vpop.f32.mrb[0].mxu0
  %v98 = vadd.f32 %v46, %v97
  %v99 = vpop.f32.mrb[0].mxu0
  %100 = vdwg.mxu0
  %v101 = vmax.f32 %v95, 0.0
  %v102 = vmax.f32 %v98, 0.0
  %v103 = vpack.c.bf16 %v102, %v101
  %v104 = vld [vmem:[%s3] sm:$0xf]
  %v105 = vld [vmem:[%s3 + $0x4] sm:$0xf]
  %v106 = vld [vmem:[%s3 + $0x8] sm:$0xf]
  %v107 = vld [vmem:[%s3 + $0xc] sm:$0xf]
  %v108 = vld [vmem:[%s3 + $0x10] sm:$0xf]
  %v109 = vld [vmem:[%s3 + $0x14] sm:$0xf]
  %v110 = vld [vmem:[%s3 + $0x18] sm:$0xf]
  %v111 = vld [vmem:[%s3 + $0x1c] sm:$0xf]
  %v112 = vld [vmem:[%s3 + $0x20] sm:$0xf]
  %v113 = vld [vmem:[%s3 + $0x24] sm:$0xf]
  %v114 = vld [vmem:[%s3 + $0x28] sm:$0xf]
  %v115 = vld [vmem:[%s3 + $0x2c] sm:$0xf]
  %v116 = vld [vmem:[%s3 + $0x30] sm:$0xf]
  %v117 = vld [vmem:[%s3 + $0x34] sm:$0xf]
  %v118 = vld [vmem:[%s3 + $0x38] sm:$0xf]
  %v119 = vld [vmem:[%s3 + $0x3c] sm:$0xf]
  %v120 = vld [vmem:[%s10 + $0x1] sm:$0x1]
  %v121 = vlaneseq
  %v122 = vshrl.u32 %v121, 7
  %v123 = vsub.s32 0, %v122
  %v124 = vrot.slane %v120, %v123
  %v141 = vunpack.c.l.b16 %v104
  %v142 = vunpack.c.l.b16 %v105
  %v143 = vunpack.c.l.b16 %v106
  %v144 = vunpack.c.l.b16 %v107
  %v145 = vunpack.c.l.b16 %v108
  %v146 = vunpack.c.l.b16 %v109
  %v147 = vunpack.c.l.b16 %v110
  %v148 = vunpack.c.l.b16 %v111
  %v149 = vunpack.c.l.b16 %v112
  %v150 = vunpack.c.l.b16 %v113
  %v151 = vunpack.c.l.b16 %v114
  %v152 = vunpack.c.l.b16 %v115
  %v153 = vunpack.c.l.b16 %v116
  %v154 = vunpack.c.l.b16 %v117
  %v155 = vunpack.c.l.b16 %v118
  %v156 = vunpack.c.l.b16 %v119
  %v157 = vpack.c.b16 %v142, %v141
  %v158 = vpack.c.b16 %v144, %v143
  %v159 = vpack.c.b16 %v146, %v145
  %v160 = vpack.c.b16 %v148, %v147
  %v161 = vpack.c.b16 %v150, %v149
  %v162 = vpack.c.b16 %v152, %v151
  %v163 = vpack.c.b16 %v154, %v153
  %v164 = vpack.c.b16 %v156, %v155
  %173 = vmatprep.subr.bf16.mxu0 0
  %174 = vmatpush1.bf16.msra.mxu0 %v157
  %175 = vmatprep.subr.bf16.mxu0 0
  %176 = vmatpush1.bf16.msra.mxu0 %v158
  %177 = vmatprep.subr.bf16.mxu0 0
  %178 = vmatpush1.bf16.msra.mxu0 %v159
  %179 = vmatprep.subr.bf16.mxu0 0
  %180 = vmatpush1.bf16.msra.mxu0 %v160
  %181 = vmatprep.subr.bf16.mxu0 0
  %182 = vmatpush1.bf16.msra.mxu0 %v161
  %183 = vmatprep.subr.bf16.mxu0 0
  %184 = vmatpush1.bf16.msra.mxu0 %v162
  %185 = vmatprep.subr.bf16.mxu0 0
  %186 = vmatpush1.bf16.msra.mxu0 %v163
  %187 = vmatprep.subr.bf16.mxu0 0
  %188 = vmatpush1.bf16.msra.mxu0 %v164
  %189 = vmatprep.subr.bf16.mxu0 0
  %190 = vmatpush1.bf16.msra.mxu0 0
  %191 = vmatprep.subr.bf16.mxu0 0
  %192 = vmatpush1.bf16.msra.mxu0 0
  %193 = vmatprep.subr.bf16.mxu0 0
  %194 = vmatpush1.bf16.msra.mxu0 0
  %195 = vmatprep.subr.bf16.mxu0 0
  %196 = vmatpush1.bf16.msra.mxu0 0
  %197 = vmatprep.subr.bf16.mxu0 0
  %198 = vmatpush1.bf16.msra.mxu0 0
  %199 = vmatprep.subr.bf16.mxu0 0
  %200 = vmatpush1.bf16.msra.mxu0 0
  %201 = vmatprep.subr.bf16.mxu0 0
  %202 = vmatpush1.bf16.msra.mxu0 0
  %203 = vmatprep.subr.bf16.mxu0 0
  %204 = vmatpush1.bf16.msra.mxu0 0
  %205 = vmatprep.mubr.bf16.mxu0 0
  %206 = vmatmul.mubr.bf16.gmra.mrb[0].mxu0 %v103
  %v207 = vpop.f32.mrb[0].mxu0
  %v208 = vadd.f32 %v124, %v207
  %v209 = vpop.f32.mrb[0].mxu0
  %v210 = vpop.f32.mrb[0].mxu0
  %v211 = vadd.f32 %v124, %v210
  %v212 = vpop.f32.mrb[0].mxu0
  %213 = vdwg.mxu0
  %v214 = vmax.f32 %v208, 0.0
  %v215 = vmax.f32 %v211, 0.0
  %v216 = vpack.c.bf16 %v215, %v214
  %v217 = vld [vmem:[%s4] sm:$0xf]
  %v218 = vld [vmem:[%s4 + $0x4] sm:$0xf]
  %v219 = vld [vmem:[%s4 + $0x8] sm:$0xf]
  %v220 = vld [vmem:[%s4 + $0xc] sm:$0xf]
  %v221 = vld [vmem:[%s4 + $0x10] sm:$0xf]
  %v222 = vld [vmem:[%s4 + $0x14] sm:$0xf]
  %v223 = vld [vmem:[%s4 + $0x18] sm:$0xf]
  %v224 = vld [vmem:[%s4 + $0x1c] sm:$0xf]
  %v225 = vld [vmem:[%s4 + $0x20] sm:$0xf]
  %v226 = vld [vmem:[%s4 + $0x24] sm:$0xf]
  %v227 = vld [vmem:[%s4 + $0x28] sm:$0xf]
  %v228 = vld [vmem:[%s4 + $0x2c] sm:$0xf]
  %v229 = vld [vmem:[%s4 + $0x30] sm:$0xf]
  %v230 = vld [vmem:[%s4 + $0x34] sm:$0xf]
  %v231 = vld [vmem:[%s4 + $0x38] sm:$0xf]
  %v232 = vld [vmem:[%s4 + $0x3c] sm:$0xf]
  %v233 = vld [vmem:[%s10 + $0x2] sm:$0x1]
  %v234 = vlaneseq
  %v235 = vshrl.u32 %v234, 7
  %v236 = vsub.s32 0, %v235
  %v237 = vrot.slane %v233, %v236
  %v254 = vunpack.c.l.b16 %v217
  %v255 = vunpack.c.l.b16 %v218
  %v256 = vunpack.c.l.b16 %v219
  %v257 = vunpack.c.l.b16 %v220
  %v258 = vunpack.c.l.b16 %v221
  %v259 = vunpack.c.l.b16 %v222
  %v260 = vunpack.c.l.b16 %v223
  %v261 = vunpack.c.l.b16 %v224
  %v262 = vunpack.c.l.b16 %v225
  %v263 = vunpack.c.l.b16 %v226
  %v264 = vunpack.c.l.b16 %v227
  %v265 = vunpack.c.l.b16 %v228
  %v266 = vunpack.c.l.b16 %v229
  %v267 = vunpack.c.l.b16 %v230
  %v268 = vunpack.c.l.b16 %v231
  %v269 = vunpack.c.l.b16 %v232
  %v270 = vpack.c.b16 %v255, %v254
  %v271 = vpack.c.b16 %v257, %v256
  %v272 = vpack.c.b16 %v259, %v258
  %v273 = vpack.c.b16 %v261, %v260
  %v274 = vpack.c.b16 %v263, %v262
  %v275 = vpack.c.b16 %v265, %v264
  %v276 = vpack.c.b16 %v267, %v266
  %v277 = vpack.c.b16 %v269, %v268
  %286 = vmatprep.subr.bf16.mxu0 0
  %287 = vmatpush1.bf16.msra.mxu0 %v270
  %288 = vmatprep.subr.bf16.mxu0 0
  %289 = vmatpush1.bf16.msra.mxu0 %v271
  %290 = vmatprep.subr.bf16.mxu0 0
  %291 = vmatpush1.bf16.msra.mxu0 %v272
  %292 = vmatprep.subr.bf16.mxu0 0
  %293 = vmatpush1.bf16.msra.mxu0 %v273
  %294 = vmatprep.subr.bf16.mxu0 0
  %295 = vmatpush1.bf16.msra.mxu0 %v274
  %296 = vmatprep.subr.bf16.mxu0 0
  %297 = vmatpush1.bf16.msra.mxu0 %v275
  %298 = vmatprep.subr.bf16.mxu0 0
  %299 = vmatpush1.bf16.msra.mxu0 %v276
  %300 = vmatprep.subr.bf16.mxu0 0
  %301 = vmatpush1.bf16.msra.mxu0 %v277
  %302 = vmatprep.subr.bf16.mxu0 0
  %303 = vmatpush1.bf16.msra.mxu0 0
  %304 = vmatprep.subr.bf16.mxu0 0
  %305 = vmatpush1.bf16.msra.mxu0 0
  %306 = vmatprep.subr.bf16.mxu0 0
  %307 = vmatpush1.bf16.msra.mxu0 0
  %308 = vmatprep.subr.bf16.mxu0 0
  %309 = vmatpush1.bf16.msra.mxu0 0
  %310 = vmatprep.subr.bf16.mxu0 0
  %311 = vmatpush1.bf16.msra.mxu0 0
  %312 = vmatprep.subr.bf16.mxu0 0
  %313 = vmatpush1.bf16.msra.mxu0 0
  %314 = vmatprep.subr.bf16.mxu0 0
  %315 = vmatpush1.bf16.msra.mxu0 0
  %316 = vmatprep.subr.bf16.mxu0 0
  %317 = vmatpush1.bf16.msra.mxu0 0
  %318 = vmatprep.mubr.bf16.mxu0 0
  %319 = vmatmul.mubr.bf16.gmra.mrb[0].mxu0 %v216
  %v320 = vpop.f32.mrb[0].mxu0
  %v321 = vadd.f32 %v237, %v320
  %v322 = vpop.f32.mrb[0].mxu0
  %v323 = vpop.f32.mrb[0].mxu0
  %v324 = vadd.f32 %v237, %v323
  %v325 = vpop.f32.mrb[0].mxu0
  %326 = vdwg.mxu0
  %v327 = vmax.f32 %v321, 0.0
  %v328 = vmax.f32 %v324, 0.0
  %v329 = vpack.c.bf16 %v328, %v327
  %v330 = vld [vmem:[%s5] sm:$0xf]
  %v331 = vld [vmem:[%s5 + $0x4] sm:$0xf]
  %v332 = vld [vmem:[%s5 + $0x8] sm:$0xf]
  %v333 = vld [vmem:[%s5 + $0xc] sm:$0xf]
  %v334 = vld [vmem:[%s5 + $0x10] sm:$0xf]
  %v335 = vld [vmem:[%s5 + $0x14] sm:$0xf]
  %v336 = vld [vmem:[%s5 + $0x18] sm:$0xf]
  %v337 = vld [vmem:[%s5 + $0x1c] sm:$0xf]
  %v338 = vld [vmem:[%s5 + $0x20] sm:$0xf]
  %v339 = vld [vmem:[%s5 + $0x24] sm:$0xf]
  %v340 = vld [vmem:[%s5 + $0x28] sm:$0xf]
  %v341 = vld [vmem:[%s5 + $0x2c] sm:$0xf]
  %v342 = vld [vmem:[%s5 + $0x30] sm:$0xf]
  %v343 = vld [vmem:[%s5 + $0x34] sm:$0xf]
  %v344 = vld [vmem:[%s5 + $0x38] sm:$0xf]
  %v345 = vld [vmem:[%s5 + $0x3c] sm:$0xf]
  %v346 = vld [vmem:[%s10 + $0x3] sm:$0x1]
  %v347 = vlaneseq
  %v348 = vshrl.u32 %v347, 7
  %v349 = vsub.s32 0, %v348
  %v350 = vrot.slane %v346, %v349
  %v367 = vunpack.c.l.b16 %v330
  %v368 = vunpack.c.l.b16 %v331
  %v369 = vunpack.c.l.b16 %v332
  %v370 = vunpack.c.l.b16 %v333
  %v371 = vunpack.c.l.b16 %v334
  %v372 = vunpack.c.l.b16 %v335
  %v373 = vunpack.c.l.b16 %v336
  %v374 = vunpack.c.l.b16 %v337
  %v375 = vunpack.c.l.b16 %v338
  %v376 = vunpack.c.l.b16 %v339
  %v377 = vunpack.c.l.b16 %v340
  %v378 = vunpack.c.l.b16 %v341
  %v379 = vunpack.c.l.b16 %v342
  %v380 = vunpack.c.l.b16 %v343
  %v381 = vunpack.c.l.b16 %v344
  %v382 = vunpack.c.l.b16 %v345
  %v383 = vpack.c.b16 %v368, %v367
  %v384 = vpack.c.b16 %v370, %v369
  %v385 = vpack.c.b16 %v372, %v371
  %v386 = vpack.c.b16 %v374, %v373
  %v387 = vpack.c.b16 %v376, %v375
  %v388 = vpack.c.b16 %v378, %v377
  %v389 = vpack.c.b16 %v380, %v379
  %v390 = vpack.c.b16 %v382, %v381
  %399 = vmatprep.subr.bf16.mxu0 0
  %400 = vmatpush1.bf16.msra.mxu0 %v383
  %401 = vmatprep.subr.bf16.mxu0 0
  %402 = vmatpush1.bf16.msra.mxu0 %v384
  %403 = vmatprep.subr.bf16.mxu0 0
  %404 = vmatpush1.bf16.msra.mxu0 %v385
  %405 = vmatprep.subr.bf16.mxu0 0
  %406 = vmatpush1.bf16.msra.mxu0 %v386
  %407 = vmatprep.subr.bf16.mxu0 0
  %408 = vmatpush1.bf16.msra.mxu0 %v387
  %409 = vmatprep.subr.bf16.mxu0 0
  %410 = vmatpush1.bf16.msra.mxu0 %v388
  %411 = vmatprep.subr.bf16.mxu0 0
  %412 = vmatpush1.bf16.msra.mxu0 %v389
  %413 = vmatprep.subr.bf16.mxu0 0
  %414 = vmatpush1.bf16.msra.mxu0 %v390
  %415 = vmatprep.subr.bf16.mxu0 0
  %416 = vmatpush1.bf16.msra.mxu0 0
  %417 = vmatprep.subr.bf16.mxu0 0
  %418 = vmatpush1.bf16.msra.mxu0 0
  %419 = vmatprep.subr.bf16.mxu0 0
  %420 = vmatpush1.bf16.msra.mxu0 0
  %421 = vmatprep.subr.bf16.mxu0 0
  %422 = vmatpush1.bf16.msra.mxu0 0
  %423 = vmatprep.subr.bf16.mxu0 0
  %424 = vmatpush1.bf16.msra.mxu0 0
  %425 = vmatprep.subr.bf16.mxu0 0
  %426 = vmatpush1.bf16.msra.mxu0 0
  %427 = vmatprep.subr.bf16.mxu0 0
  %428 = vmatpush1.bf16.msra.mxu0 0
  %429 = vmatprep.subr.bf16.mxu0 0
  %430 = vmatpush1.bf16.msra.mxu0 0
  %431 = vmatprep.mubr.bf16.mxu0 0
  %432 = vmatmul.mubr.bf16.gmra.mrb[0].mxu0 %v329
  %v433 = vpop.f32.mrb[0].mxu0
  %v434 = vadd.f32 %v350, %v433
  %v435 = vpop.f32.mrb[0].mxu0
  %v436 = vpop.f32.mrb[0].mxu0
  %v437 = vadd.f32 %v350, %v436
  %v438 = vpop.f32.mrb[0].mxu0
  %439 = vdwg.mxu0
  %v440 = vld [vmem:[%s1] sm:$0x3]
  %vm441 = vcmask 130048
  %v443 = vsel %vm441, %v440, 0
  %445 = vmatprep.subr.mxu0 0.0
  %446 = vmatpush1.msra.mxu0 %v434
  %447 = vmatprep.subr.mxu0 0.0
  %448 = vmatpush1.msra.mxu0 %v437
  %449 = vmatprep.subr.mxu0 0.0
  %450 = vmatpush1.msra.mxu0 0.0
  %451 = vmatprep.subr.mxu0 0.0
  %452 = vmatpush1.msra.mxu0 0.0
  %453 = vmatprep.subr.mxu0 0.0
  %454 = vmatpush1.msra.mxu0 0.0
  %455 = vmatprep.subr.mxu0 0.0
  %456 = vmatpush1.msra.mxu0 0.0
  %457 = vmatprep.subr.mxu0 0.0
  %458 = vmatpush1.msra.mxu0 0.0
  %459 = vmatprep.subr.mxu0 0.0
  %460 = vmatpush1.msra.mxu0 0.0
  %461 = vmatprep.subr.mxu0 0.0
  %462 = vmatpush1.msra.mxu0 0.0
  %463 = vmatprep.subr.mxu0 0.0
  %464 = vmatpush1.msra.mxu0 0.0
  %465 = vmatprep.subr.mxu0 0.0
  %466 = vmatpush1.msra.mxu0 0.0
  %467 = vmatprep.subr.mxu0 0.0
  %468 = vmatpush1.msra.mxu0 0.0
  %469 = vmatprep.subr.mxu0 0.0
  %470 = vmatpush1.msra.mxu0 0.0
  %471 = vmatprep.subr.mxu0 0.0
  %472 = vmatpush1.msra.mxu0 0.0
  %473 = vmatprep.subr.mxu0 0.0
  %474 = vmatpush1.msra.mxu0 0.0
  %475 = vmatprep.subr.mxu0 0.0
  %476 = vmatpush1.msra.mxu0 0.0
  %477 = vmatprep.subr.mxu0 0.0
  %478 = vmatpush1.msra.mxu0 0.0
  %479 = vmatprep.subr.mxu0 0.0
  %480 = vmatpush1.msra.mxu0 0.0
  %481 = vmatprep.subr.mxu0 0.0
  %482 = vmatpush1.msra.mxu0 0.0
  %483 = vmatprep.subr.mxu0 0.0
  %484 = vmatpush1.msra.mxu0 0.0
  %485 = vmatprep.subr.mxu0 0.0
  %486 = vmatpush1.msra.mxu0 0.0
  %487 = vmatprep.subr.mxu0 0.0
  %488 = vmatpush1.msra.mxu0 0.0
  %489 = vmatprep.subr.mxu0 0.0
  %490 = vmatpush1.msra.mxu0 0.0
  %491 = vmatprep.subr.mxu0 0.0
  %492 = vmatpush1.msra.mxu0 0.0
  %493 = vmatprep.subr.mxu0 0.0
  %494 = vmatpush1.msra.mxu0 0.0
  %495 = vmatprep.subr.mxu0 0.0
  %496 = vmatpush1.msra.mxu0 0.0
  %497 = vmatprep.subr.mxu0 0.0
  %498 = vmatpush1.msra.mxu0 0.0
  %499 = vmatprep.subr.mxu0 0.0
  %500 = vmatpush1.msra.mxu0 0.0
  %501 = vmatprep.subr.mxu0 0.0
  %502 = vmatpush1.msra.mxu0 0.0
  %503 = vmatprep.subr.mxu0 0.0
  %504 = vmatpush1.msra.mxu0 0.0
  %505 = vmatprep.subr.mxu0 0.0
  %506 = vmatpush1.msra.mxu0 0.0
  %507 = vmatprep.subr.mxu0 0.0
  %508 = vmatpush1.msra.mxu0 0.0
  %509 = vmatprep.mubr.f32.mxu0 0.0
  %510 = vmatmul.mubr.f32.gmra.mrb[0].mxu0 %v443
  %v511 = vpop.f32.mrb[0].mxu0
  %v512 = vadd.f32 0.0, %v511
  %v513 = vpop.f32.mrb[0].mxu0
  %514 = vdwg.mxu0
  %v515 = vpack.c.bf16 %v512, %v512
  %v516 = vld [vmem:[%s6] sm:$0xf]
  %v517 = vld [vmem:[%s6 + $0x4] sm:$0xf]
  %v518 = vld [vmem:[%s6 + $0x8] sm:$0xf]
  %v519 = vld [vmem:[%s6 + $0xc] sm:$0xf]
  %v520 = vld [vmem:[%s6 + $0x10] sm:$0xf]
  %v521 = vld [vmem:[%s6 + $0x14] sm:$0xf]
  %v522 = vld [vmem:[%s6 + $0x18] sm:$0xf]
  %v523 = vld [vmem:[%s6 + $0x1c] sm:$0xf]
  %v524 = vld [vmem:[%s6 + $0x20] sm:$0xf]
  %v525 = vld [vmem:[%s6 + $0x24] sm:$0xf]
  %v526 = vld [vmem:[%s6 + $0x28] sm:$0xf]
  %v527 = vld [vmem:[%s6 + $0x2c] sm:$0xf]
  %v528 = vld [vmem:[%s6 + $0x30] sm:$0xf]
  %v529 = vld [vmem:[%s6 + $0x34] sm:$0xf]
  %v530 = vld [vmem:[%s6 + $0x38] sm:$0xf]
  %v531 = vld [vmem:[%s6 + $0x3c] sm:$0xf]
  %v532 = vld [vmem:[%s10 + $0x4] sm:$0x1]
  %v533 = vlaneseq
  %v534 = vshrl.u32 %v533, 7
  %v535 = vsub.s32 0, %v534
  %v536 = vrot.slane %v532, %v535
  %v553 = vunpack.c.l.b16 %v516
  %v554 = vunpack.c.l.b16 %v517
  %v555 = vunpack.c.l.b16 %v518
  %v556 = vunpack.c.l.b16 %v519
  %v557 = vunpack.c.l.b16 %v520
  %v558 = vunpack.c.l.b16 %v521
  %v559 = vunpack.c.l.b16 %v522
  %v560 = vunpack.c.l.b16 %v523
  %v561 = vunpack.c.l.b16 %v524
  %v562 = vunpack.c.l.b16 %v525
  %v563 = vunpack.c.l.b16 %v526
  %v564 = vunpack.c.l.b16 %v527
  %v565 = vunpack.c.l.b16 %v528
  %v566 = vunpack.c.l.b16 %v529
  %v567 = vunpack.c.l.b16 %v530
  %v568 = vunpack.c.l.b16 %v531
  %v569 = vpack.c.b16 %v554, %v553
  %v570 = vpack.c.b16 %v556, %v555
  %v571 = vpack.c.b16 %v558, %v557
  %v572 = vpack.c.b16 %v560, %v559
  %v573 = vpack.c.b16 %v562, %v561
  %v574 = vpack.c.b16 %v564, %v563
  %v575 = vpack.c.b16 %v566, %v565
  %v576 = vpack.c.b16 %v568, %v567
  %585 = vmatprep.subr.bf16.mxu0 0
  %586 = vmatpush1.bf16.msra.mxu0 %v569
  %587 = vmatprep.subr.bf16.mxu0 0
  %588 = vmatpush1.bf16.msra.mxu0 %v570
  %589 = vmatprep.subr.bf16.mxu0 0
  %590 = vmatpush1.bf16.msra.mxu0 %v571
  %591 = vmatprep.subr.bf16.mxu0 0
  %592 = vmatpush1.bf16.msra.mxu0 %v572
  %593 = vmatprep.subr.bf16.mxu0 0
  %594 = vmatpush1.bf16.msra.mxu0 %v573
  %595 = vmatprep.subr.bf16.mxu0 0
  %596 = vmatpush1.bf16.msra.mxu0 %v574
  %597 = vmatprep.subr.bf16.mxu0 0
  %598 = vmatpush1.bf16.msra.mxu0 %v575
  %599 = vmatprep.subr.bf16.mxu0 0
  %600 = vmatpush1.bf16.msra.mxu0 %v576
  %601 = vmatprep.subr.bf16.mxu0 0
  %602 = vmatpush1.bf16.msra.mxu0 0
  %603 = vmatprep.subr.bf16.mxu0 0
  %604 = vmatpush1.bf16.msra.mxu0 0
  %605 = vmatprep.subr.bf16.mxu0 0
  %606 = vmatpush1.bf16.msra.mxu0 0
  %607 = vmatprep.subr.bf16.mxu0 0
  %608 = vmatpush1.bf16.msra.mxu0 0
  %609 = vmatprep.subr.bf16.mxu0 0
  %610 = vmatpush1.bf16.msra.mxu0 0
  %611 = vmatprep.subr.bf16.mxu0 0
  %612 = vmatpush1.bf16.msra.mxu0 0
  %613 = vmatprep.subr.bf16.mxu0 0
  %614 = vmatpush1.bf16.msra.mxu0 0
  %615 = vmatprep.subr.bf16.mxu0 0
  %616 = vmatpush1.bf16.msra.mxu0 0
  %617 = vmatprep.mubr.bf16.mxu0 0
  %618 = vmatmul.mubr.bf16.gmra.mrb[0].mxu0 %v515
  %v619 = vpop.f32.mrb[0].mxu0
  %v620 = vadd.f32 %v536, %v619
  %v621 = vpop.f32.mrb[0].mxu0
  %v622 = vpop.f32.mrb[0].mxu0
  %v623 = vpop.f32.mrb[0].mxu0
  %624 = vdwg.mxu0
  %v625 = vmax.f32 %v620, 0.0
  %v626 = vpack.c.bf16 %v625, %v625
  %v627 = vld [vmem:[%s7] sm:$0xf]
  %v628 = vld [vmem:[%s7 + $0x4] sm:$0xf]
  %v629 = vld [vmem:[%s7 + $0x8] sm:$0xf]
  %v630 = vld [vmem:[%s7 + $0xc] sm:$0xf]
  %v631 = vld [vmem:[%s7 + $0x10] sm:$0xf]
  %v632 = vld [vmem:[%s7 + $0x14] sm:$0xf]
  %v633 = vld [vmem:[%s7 + $0x18] sm:$0xf]
  %v634 = vld [vmem:[%s7 + $0x1c] sm:$0xf]
  %v635 = vld [vmem:[%s7 + $0x20] sm:$0xf]
  %v636 = vld [vmem:[%s7 + $0x24] sm:$0xf]
  %v637 = vld [vmem:[%s7 + $0x28] sm:$0xf]
  %v638 = vld [vmem:[%s7 + $0x2c] sm:$0xf]
  %v639 = vld [vmem:[%s7 + $0x30] sm:$0xf]
  %v640 = vld [vmem:[%s7 + $0x34] sm:$0xf]
  %v641 = vld [vmem:[%s7 + $0x38] sm:$0xf]
  %v642 = vld [vmem:[%s7 + $0x3c] sm:$0xf]
  %v643 = vld [vmem:[%s10 + $0x5] sm:$0x1]
  %v644 = vlaneseq
  %v645 = vshrl.u32 %v644, 7
  %v646 = vsub.s32 0, %v645
  %v647 = vrot.slane %v643, %v646
  %v664 = vunpack.c.l.b16 %v627
  %v665 = vunpack.c.l.b16 %v628
  %v666 = vunpack.c.l.b16 %v629
  %v667 = vunpack.c.l.b16 %v630
  %v668 = vunpack.c.l.b16 %v631
  %v669 = vunpack.c.l.b16 %v632
  %v670 = vunpack.c.l.b16 %v633
  %v671 = vunpack.c.l.b16 %v634
  %v672 = vunpack.c.l.b16 %v635
  %v673 = vunpack.c.l.b16 %v636
  %v674 = vunpack.c.l.b16 %v637
  %v675 = vunpack.c.l.b16 %v638
  %v676 = vunpack.c.l.b16 %v639
  %v677 = vunpack.c.l.b16 %v640
  %v678 = vunpack.c.l.b16 %v641
  %v679 = vunpack.c.l.b16 %v642
  %v680 = vpack.c.b16 %v665, %v664
  %v681 = vpack.c.b16 %v667, %v666
  %v682 = vpack.c.b16 %v669, %v668
  %v683 = vpack.c.b16 %v671, %v670
  %v684 = vpack.c.b16 %v673, %v672
  %v685 = vpack.c.b16 %v675, %v674
  %v686 = vpack.c.b16 %v677, %v676
  %v687 = vpack.c.b16 %v679, %v678
  %696 = vmatprep.subr.bf16.mxu0 0
  %697 = vmatpush1.bf16.msra.mxu0 %v680
  %698 = vmatprep.subr.bf16.mxu0 0
  %699 = vmatpush1.bf16.msra.mxu0 %v681
  %700 = vmatprep.subr.bf16.mxu0 0
  %701 = vmatpush1.bf16.msra.mxu0 %v682
  %702 = vmatprep.subr.bf16.mxu0 0
  %703 = vmatpush1.bf16.msra.mxu0 %v683
  %704 = vmatprep.subr.bf16.mxu0 0
  %705 = vmatpush1.bf16.msra.mxu0 %v684
  %706 = vmatprep.subr.bf16.mxu0 0
  %707 = vmatpush1.bf16.msra.mxu0 %v685
  %708 = vmatprep.subr.bf16.mxu0 0
  %709 = vmatpush1.bf16.msra.mxu0 %v686
  %710 = vmatprep.subr.bf16.mxu0 0
  %711 = vmatpush1.bf16.msra.mxu0 %v687
  %712 = vmatprep.subr.bf16.mxu0 0
  %713 = vmatpush1.bf16.msra.mxu0 0
  %714 = vmatprep.subr.bf16.mxu0 0
  %715 = vmatpush1.bf16.msra.mxu0 0
  %716 = vmatprep.subr.bf16.mxu0 0
  %717 = vmatpush1.bf16.msra.mxu0 0
  %718 = vmatprep.subr.bf16.mxu0 0
  %719 = vmatpush1.bf16.msra.mxu0 0
  %720 = vmatprep.subr.bf16.mxu0 0
  %721 = vmatpush1.bf16.msra.mxu0 0
  %722 = vmatprep.subr.bf16.mxu0 0
  %723 = vmatpush1.bf16.msra.mxu0 0
  %724 = vmatprep.subr.bf16.mxu0 0
  %725 = vmatpush1.bf16.msra.mxu0 0
  %726 = vmatprep.subr.bf16.mxu0 0
  %727 = vmatpush1.bf16.msra.mxu0 0
  %728 = vmatprep.mubr.bf16.mxu0 0
  %729 = vmatmul.mubr.bf16.gmra.mrb[0].mxu0 %v626
  %v730 = vpop.f32.mrb[0].mxu0
  %v731 = vadd.f32 %v647, %v730
  %v732 = vpop.f32.mrb[0].mxu0
  %v733 = vpop.f32.mrb[0].mxu0
  %v734 = vpop.f32.mrb[0].mxu0
  %735 = vdwg.mxu0
  %v736 = vmax.f32 %v731, 0.0
  %v737 = vpack.c.bf16 %v736, %v736
  %v738 = vld [vmem:[%s8] sm:$0xf]
  %v739 = vld [vmem:[%s8 + $0x4] sm:$0xf]
  %v740 = vld [vmem:[%s8 + $0x8] sm:$0xf]
  %v741 = vld [vmem:[%s8 + $0xc] sm:$0xf]
  %v742 = vld [vmem:[%s8 + $0x10] sm:$0xf]
  %v743 = vld [vmem:[%s8 + $0x14] sm:$0xf]
  %v744 = vld [vmem:[%s8 + $0x18] sm:$0xf]
  %v745 = vld [vmem:[%s8 + $0x1c] sm:$0xf]
  %v746 = vld [vmem:[%s8 + $0x20] sm:$0xf]
  %v747 = vld [vmem:[%s8 + $0x24] sm:$0xf]
  %v748 = vld [vmem:[%s8 + $0x28] sm:$0xf]
  %v749 = vld [vmem:[%s8 + $0x2c] sm:$0xf]
  %v750 = vld [vmem:[%s8 + $0x30] sm:$0xf]
  %v751 = vld [vmem:[%s8 + $0x34] sm:$0xf]
  %v752 = vld [vmem:[%s8 + $0x38] sm:$0xf]
  %v753 = vld [vmem:[%s8 + $0x3c] sm:$0xf]
  %v754 = vld [vmem:[%s10 + $0x6] sm:$0x1]
  %v755 = vlaneseq
  %v756 = vshrl.u32 %v755, 7
  %v757 = vsub.s32 0, %v756
  %v758 = vrot.slane %v754, %v757
  %v775 = vunpack.c.l.b16 %v738
  %v776 = vunpack.c.l.b16 %v739
  %v777 = vunpack.c.l.b16 %v740
  %v778 = vunpack.c.l.b16 %v741
  %v779 = vunpack.c.l.b16 %v742
  %v780 = vunpack.c.l.b16 %v743
  %v781 = vunpack.c.l.b16 %v744
  %v782 = vunpack.c.l.b16 %v745
  %v783 = vunpack.c.l.b16 %v746
  %v784 = vunpack.c.l.b16 %v747
  %v785 = vunpack.c.l.b16 %v748
  %v786 = vunpack.c.l.b16 %v749
  %v787 = vunpack.c.l.b16 %v750
  %v788 = vunpack.c.l.b16 %v751
  %v789 = vunpack.c.l.b16 %v752
  %v790 = vunpack.c.l.b16 %v753
  %v791 = vpack.c.b16 %v776, %v775
  %v792 = vpack.c.b16 %v778, %v777
  %v793 = vpack.c.b16 %v780, %v779
  %v794 = vpack.c.b16 %v782, %v781
  %v795 = vpack.c.b16 %v784, %v783
  %v796 = vpack.c.b16 %v786, %v785
  %v797 = vpack.c.b16 %v788, %v787
  %v798 = vpack.c.b16 %v790, %v789
  %807 = vmatprep.subr.bf16.mxu0 0
  %808 = vmatpush1.bf16.msra.mxu0 %v791
  %809 = vmatprep.subr.bf16.mxu0 0
  %810 = vmatpush1.bf16.msra.mxu0 %v792
  %811 = vmatprep.subr.bf16.mxu0 0
  %812 = vmatpush1.bf16.msra.mxu0 %v793
  %813 = vmatprep.subr.bf16.mxu0 0
  %814 = vmatpush1.bf16.msra.mxu0 %v794
  %815 = vmatprep.subr.bf16.mxu0 0
  %816 = vmatpush1.bf16.msra.mxu0 %v795
  %817 = vmatprep.subr.bf16.mxu0 0
  %818 = vmatpush1.bf16.msra.mxu0 %v796
  %819 = vmatprep.subr.bf16.mxu0 0
  %820 = vmatpush1.bf16.msra.mxu0 %v797
  %821 = vmatprep.subr.bf16.mxu0 0
  %822 = vmatpush1.bf16.msra.mxu0 %v798
  %823 = vmatprep.subr.bf16.mxu0 0
  %824 = vmatpush1.bf16.msra.mxu0 0
  %825 = vmatprep.subr.bf16.mxu0 0
  %826 = vmatpush1.bf16.msra.mxu0 0
  %827 = vmatprep.subr.bf16.mxu0 0
  %828 = vmatpush1.bf16.msra.mxu0 0
  %829 = vmatprep.subr.bf16.mxu0 0
  %830 = vmatpush1.bf16.msra.mxu0 0
  %831 = vmatprep.subr.bf16.mxu0 0
  %832 = vmatpush1.bf16.msra.mxu0 0
  %833 = vmatprep.subr.bf16.mxu0 0
  %834 = vmatpush1.bf16.msra.mxu0 0
  %835 = vmatprep.subr.bf16.mxu0 0
  %836 = vmatpush1.bf16.msra.mxu0 0
  %837 = vmatprep.subr.bf16.mxu0 0
  %838 = vmatpush1.bf16.msra.mxu0 0
  %839 = vmatprep.mubr.bf16.mxu0 0
  %840 = vmatmul.mubr.bf16.gmra.mrb[0].mxu0 %v737
  %v841 = vpop.f32.mrb[0].mxu0
  %v842 = vadd.f32 %v758, %v841
  %v843 = vpop.f32.mrb[0].mxu0
  %v844 = vpop.f32.mrb[0].mxu0
  %v845 = vpop.f32.mrb[0].mxu0
  %846 = vdwg.mxu0
  %v847 = vmax.f32 %v842, 0.0
  %v848 = vpack.c.bf16 %v847, %v847
  %v849 = vld [vmem:[%s9] sm:$0xf]
  %v850 = vld [vmem:[%s9 + $0x4] sm:$0xf]
  %v851 = vld [vmem:[%s9 + $0x8] sm:$0xf]
  %v852 = vld [vmem:[%s9 + $0xc] sm:$0xf]
  %v853 = vld [vmem:[%s9 + $0x10] sm:$0xf]
  %v854 = vld [vmem:[%s9 + $0x14] sm:$0xf]
  %v855 = vld [vmem:[%s9 + $0x18] sm:$0xf]
  %v856 = vld [vmem:[%s9 + $0x1c] sm:$0xf]
  %v857 = vld [vmem:[%s9 + $0x20] sm:$0xf]
  %v858 = vld [vmem:[%s9 + $0x24] sm:$0xf]
  %v859 = vld [vmem:[%s9 + $0x28] sm:$0xf]
  %v860 = vld [vmem:[%s9 + $0x2c] sm:$0xf]
  %v861 = vld [vmem:[%s9 + $0x30] sm:$0xf]
  %v862 = vld [vmem:[%s9 + $0x34] sm:$0xf]
  %v863 = vld [vmem:[%s9 + $0x38] sm:$0xf]
  %v864 = vld [vmem:[%s9 + $0x3c] sm:$0xf]
  %v865 = vld [vmem:[%s10 + $0x7] sm:$0x1]
  %v866 = vlaneseq
  %v867 = vshrl.u32 %v866, 7
  %v868 = vsub.s32 0, %v867
  %v869 = vrot.slane %v865, %v868
  %v886 = vunpack.c.l.b16 %v849
  %v887 = vunpack.c.l.b16 %v850
  %v888 = vunpack.c.l.b16 %v851
  %v889 = vunpack.c.l.b16 %v852
  %v890 = vunpack.c.l.b16 %v853
  %v891 = vunpack.c.l.b16 %v854
  %v892 = vunpack.c.l.b16 %v855
  %v893 = vunpack.c.l.b16 %v856
  %v894 = vunpack.c.l.b16 %v857
  %v895 = vunpack.c.l.b16 %v858
  %v896 = vunpack.c.l.b16 %v859
  %v897 = vunpack.c.l.b16 %v860
  %v898 = vunpack.c.l.b16 %v861
  %v899 = vunpack.c.l.b16 %v862
  %v900 = vunpack.c.l.b16 %v863
  %v901 = vunpack.c.l.b16 %v864
  %v902 = vpack.c.b16 %v887, %v886
  %v903 = vpack.c.b16 %v889, %v888
  %v904 = vpack.c.b16 %v891, %v890
  %v905 = vpack.c.b16 %v893, %v892
  %v906 = vpack.c.b16 %v895, %v894
  %v907 = vpack.c.b16 %v897, %v896
  %v908 = vpack.c.b16 %v899, %v898
  %v909 = vpack.c.b16 %v901, %v900
  %918 = vmatprep.subr.bf16.mxu0 0
  %919 = vmatpush1.bf16.msra.mxu0 %v902
  %920 = vmatprep.subr.bf16.mxu0 0
  %921 = vmatpush1.bf16.msra.mxu0 %v903
  %922 = vmatprep.subr.bf16.mxu0 0
  %923 = vmatpush1.bf16.msra.mxu0 %v904
  %924 = vmatprep.subr.bf16.mxu0 0
  %925 = vmatpush1.bf16.msra.mxu0 %v905
  %926 = vmatprep.subr.bf16.mxu0 0
  %927 = vmatpush1.bf16.msra.mxu0 %v906
  %928 = vmatprep.subr.bf16.mxu0 0
  %929 = vmatpush1.bf16.msra.mxu0 %v907
  %930 = vmatprep.subr.bf16.mxu0 0
  %931 = vmatpush1.bf16.msra.mxu0 %v908
  %932 = vmatprep.subr.bf16.mxu0 0
  %933 = vmatpush1.bf16.msra.mxu0 %v909
  %934 = vmatprep.subr.bf16.mxu0 0
  %935 = vmatpush1.bf16.msra.mxu0 0
  %936 = vmatprep.subr.bf16.mxu0 0
  %937 = vmatpush1.bf16.msra.mxu0 0
  %938 = vmatprep.subr.bf16.mxu0 0
  %939 = vmatpush1.bf16.msra.mxu0 0
  %940 = vmatprep.subr.bf16.mxu0 0
  %941 = vmatpush1.bf16.msra.mxu0 0
  %942 = vmatprep.subr.bf16.mxu0 0
  %943 = vmatpush1.bf16.msra.mxu0 0
  %944 = vmatprep.subr.bf16.mxu0 0
  %945 = vmatpush1.bf16.msra.mxu0 0
  %946 = vmatprep.subr.bf16.mxu0 0
  %947 = vmatpush1.bf16.msra.mxu0 0
  %948 = vmatprep.subr.bf16.mxu0 0
  %949 = vmatpush1.bf16.msra.mxu0 0
  %950 = vmatprep.mubr.bf16.mxu0 0
  %951 = vmatmul.mubr.bf16.gmra.mrb[0].mxu0 %v848
  %v952 = vpop.f32.mrb[0].mxu0
  %v953 = vadd.f32 %v869, %v952
  %v954 = vpop.f32.mrb[0].mxu0
  %v955 = vpop.f32.mrb[0].mxu0
  %v956 = vpop.f32.mrb[0].mxu0
  %957 = vdwg.mxu0
  %958 = vst [vmem:[%s11] sm:$0x3] %v953
  // Predicated region
  $region46: #{deepset_forward.1} parent=0 // pred_check
    _
  $region47: #{deepset_forward.1} parent=0 // pred_check_branch
    %960 = sbr.rel (0) target = $region49
  $region48: #{deepset_forward.1} parent=0 // pred_region
    _
  $region49: #{deepset_forward.1} parent=0 // pred_fallthru
    _
  // Predicated region
  $region50: #{deepset_forward.1} parent=0 // pred_check
    _
  $region51: #{deepset_forward.1} parent=0 // pred_check_branch
    %962 = sbr.rel (0) target = $region53
  $region52: #{deepset_forward.1} parent=0 // pred_region
    _
  $region53: #{deepset_forward.1} parent=0 // pred_fallthru
    _

</llo_original>
